<compile_context>
chip_gen: v6e
topology: v6e:2x2x1
jax: 0.10.0
libtpu: 0.0.40
codegen_flags: <defaults>
</compile_context>

<pallas_src>
import jax
import jax.numpy as jnp
from jax.experimental import pallas as pl
from jax.experimental.pallas import tpu as pltpu

FILTERS = [4, 128, 256, 128, 1]   # num_classes = 4
NUM_CLASSES = FILTERS[0]

LANES = 128            # vreg lane width
MAX_TILE_ROWS = 256    # 256 sublane rows x 128 lanes = 32768 batch elems / grid step


def _round_up(x, m):
    return ((x + m - 1) // m) * m


def discriminator_kernel(x_ref, w_ref, b_ref, o_ref):
    """x_ref: [C, tile_rows, 128] VMEM (feature-major, lane-dense batch layout).
       w_ref: [C]  SMEM collapsed weights.
       b_ref: [1]  SMEM collapsed bias.
       o_ref: [tile_rows, 128] VMEM lane-dense output."""
    acc = x_ref[0] * w_ref[0] + b_ref[0]
    for c in range(1, NUM_CLASSES):          # C = 4, unrolled at trace time (pure VPU)
        acc = acc + x_ref[c] * w_ref[c]
    o_ref[...] = jax.nn.sigmoid(acc)         # EUP sigmoid, f32 everywhere


@jax.jit
def discriminator_forward(x, params):
    """x: [B, 4] float32.  params: list of 4 (W[in,out], b[1,out]).  Returns [B, 1]."""
    B, C = x.shape
    assert C == NUM_CLASSES
    (w1, b1), (w2, b2), (w3, b3), (w4, b4) = params

    # --- one-time algebraic collapse of the 4 activation-free Linear layers (f32) ---
    w_eff = ((w1 @ w2) @ w3) @ w4                          # [4, 1]
    b_eff = (((b1 @ w2) + b2) @ w3 + b3) @ w4 + b4         # [1, 1]
    w_vec = w_eff[:, 0]                                    # [4]
    b_vec = b_eff.reshape(1)                               # [1]

    # --- layout plumbing: pad batch, feature-major lane-dense view, adaptive tile ---
    r_needed = -(-B // LANES)                      # ceil(B / 128) sublane rows needed
    r8 = _round_up(max(r_needed, 1), 8)            # (8,128) tiling constraint
    tile_rows = min(MAX_TILE_ROWS, r8)             # small batch -> single small step
    R = _round_up(r8, tile_rows)
    Bp = R * LANES
    if Bp != B:
        x = jnp.pad(x, ((0, Bp - B), (0, 0)))
    xt = x.T.reshape(C, R, LANES)                  # [4, R, 128]; batch on (sublane, lane)

    grid = (R // tile_rows,)

    out = pl.pallas_call(
        discriminator_kernel,
        out_shape=jax.ShapeDtypeStruct((R, LANES), jnp.float32),
        grid=grid,
        in_specs=[
            pl.BlockSpec((C, tile_rows, LANES), lambda i: (0, i, 0)),     # x tile
            pl.BlockSpec(memory_space=pltpu.MemorySpace.SMEM),            # w_vec (resident)
            pl.BlockSpec(memory_space=pltpu.MemorySpace.SMEM),            # b_vec (resident)
        ],
        out_specs=pl.BlockSpec((tile_rows, LANES), lambda i: (i, 0)),     # lane-dense out
        compiler_params=pltpu.CompilerParams(
            dimension_semantics=("parallel",)),    # batch axis shards across TCs (v7x)
    )(xt, w_vec, b_vec)

    # un-pad and restore the module's [B, 1] output shape
    return out.reshape(Bp, 1)[:B]


def init_params(key):
    """Matches the PyTorch init: weight ~ N(0, 0.01), bias = 0.
    PyTorch stores weight as (out, in); we keep the transposed (in, out) copy."""
    params = []
    for i in range(4):
        key, sub = jax.random.split(key)
        fan_in, fan_out = FILTERS[i], FILTERS[i + 1]
        w = 0.01 * jax.random.normal(sub, (fan_in, fan_out), dtype=jnp.float32)
        b = jnp.zeros((1, fan_out), dtype=jnp.float32)
        params.append((w, b))
    return params


def reference_forward(x, params):
    """Faithful 4-layer affine + sigmoid reference (matches the PyTorch forward)."""
    h = x
    for w, b in params:
        h = h @ w + b
    return jax.nn.sigmoid(h)


if __name__ == "__main__":
    key = jax.random.PRNGKey(0)
    key, pkey = jax.random.split(key)
    params = init_params(pkey)

    # tiny batch (pads into one minimal [8,128] tile) + a ragged mid-size batch
    for B in (2, 333, 2000):
        key, xkey = jax.random.split(key)
        x = jax.random.normal(xkey, (B, FILTERS[0]), dtype=jnp.float32)

        out = jax.block_until_ready(discriminator_forward(x, params))
        ref = reference_forward(x, params)

        assert out.shape == (B, 1)
        assert jnp.allclose(out, ref, atol=1e-5, rtol=1e-5), f"mismatch vs reference at B={B}"

    print("KERNEL_OK")
</pallas_src>

<mosaic_0001>
module attributes {stable_mosaic.version = 11 : i64} {
  func.func @discriminator_kernel(%arg0: i32, %arg1: memref<4x8x128xf32, #tpu.memory_space<vmem>>, %arg2: memref<4xf32, #tpu.memory_space<smem>>, %arg3: memref<1xf32, #tpu.memory_space<smem>>, %arg4: memref<8x128xf32, #tpu.memory_space<vmem>>) attributes {dimension_semantics = [#tpu.dimension_semantics<parallel>], iteration_bounds = array<i64: 1>, scalar_prefetch = 0 : i64, scratch_operands = 0 : i64, tpu.core_type = #tpu.core_type<tc>, window_params = [{transform_indices = @transform_0, window_bounds = array<i64: 4, 8, 128>}, {transform_indices = @transform_1, window_bounds = array<i64: 4>}, {transform_indices = @transform_2, window_bounds = array<i64: 1>}, {transform_indices = @transform_3, window_bounds = array<i64: 8, 128>}]} {
    %c0 = arith.constant 0 : index
    %c0_0 = arith.constant 0 : index
    %c0_1 = arith.constant 0 : index
    %0 = vector.load %arg1[%c0, %c0_0, %c0_1] : memref<4x8x128xf32, #tpu.memory_space<vmem>>, vector<1x8x128xf32>
    %1 = vector.shape_cast %0 : vector<1x8x128xf32> to vector<8x128xf32>
    %c0_2 = arith.constant 0 : index
    %2 = memref.load %arg2[%c0_2] : memref<4xf32, #tpu.memory_space<smem>>
    %3 = vector.broadcast %2 : f32 to vector<8x128xf32>
    %4 = arith.mulf %1, %3 : vector<8x128xf32>
    %c0_3 = arith.constant 0 : index
    %5 = memref.load %arg3[%c0_3] : memref<1xf32, #tpu.memory_space<smem>>
    %6 = vector.broadcast %5 : f32 to vector<8x128xf32>
    %7 = arith.addf %4, %6 : vector<8x128xf32>
    %c1 = arith.constant 1 : index
    %c0_4 = arith.constant 0 : index
    %c0_5 = arith.constant 0 : index
    %8 = vector.load %arg1[%c1, %c0_4, %c0_5] : memref<4x8x128xf32, #tpu.memory_space<vmem>>, vector<1x8x128xf32>
    %9 = vector.shape_cast %8 : vector<1x8x128xf32> to vector<8x128xf32>
    %c1_6 = arith.constant 1 : index
    %10 = memref.load %arg2[%c1_6] : memref<4xf32, #tpu.memory_space<smem>>
    %11 = vector.broadcast %10 : f32 to vector<8x128xf32>
    %12 = arith.mulf %9, %11 : vector<8x128xf32>
    %13 = arith.addf %7, %12 : vector<8x128xf32>
    %c2 = arith.constant 2 : index
    %c0_7 = arith.constant 0 : index
    %c0_8 = arith.constant 0 : index
    %14 = vector.load %arg1[%c2, %c0_7, %c0_8] : memref<4x8x128xf32, #tpu.memory_space<vmem>>, vector<1x8x128xf32>
    %15 = vector.shape_cast %14 : vector<1x8x128xf32> to vector<8x128xf32>
    %c2_9 = arith.constant 2 : index
    %16 = memref.load %arg2[%c2_9] : memref<4xf32, #tpu.memory_space<smem>>
    %17 = vector.broadcast %16 : f32 to vector<8x128xf32>
    %18 = arith.mulf %15, %17 : vector<8x128xf32>
    %19 = arith.addf %13, %18 : vector<8x128xf32>
    %c3 = arith.constant 3 : index
    %c0_10 = arith.constant 0 : index
    %c0_11 = arith.constant 0 : index
    %20 = vector.load %arg1[%c3, %c0_10, %c0_11] : memref<4x8x128xf32, #tpu.memory_space<vmem>>, vector<1x8x128xf32>
    %21 = vector.shape_cast %20 : vector<1x8x128xf32> to vector<8x128xf32>
    %c3_12 = arith.constant 3 : index
    %22 = memref.load %arg2[%c3_12] : memref<4xf32, #tpu.memory_space<smem>>
    %23 = vector.broadcast %22 : f32 to vector<8x128xf32>
    %24 = arith.mulf %21, %23 : vector<8x128xf32>
    %25 = arith.addf %19, %24 : vector<8x128xf32>
    %26 = arith.negf %25 : vector<8x128xf32>
    %27 = math.exp %26 : vector<8x128xf32>
    %cst = arith.constant 1.000000e+00 : f32
    %28 = vector.broadcast %cst : f32 to vector<8x128xf32>
    %29 = arith.addf %28, %27 : vector<8x128xf32>
    %30 = arith.divf %28, %29 : vector<8x128xf32>
    %c0_13 = arith.constant 0 : index
    %c0_14 = arith.constant 0 : index
    %31 = vector.load %arg4[%c0_13, %c0_14] : memref<8x128xf32, #tpu.memory_space<vmem>>, vector<8x128xf32>
    tpu.vector_store %arg4[%c0_13, %c0_14], %30 {strides = array<i32>} : memref<8x128xf32, #tpu.memory_space<vmem>>, vector<8x128xf32>,
    return
  }
  func.func @transform_0(%arg0: i32) -> (i32, i32, i32) {
    %c0_i32 = arith.constant 0 : i32
    %c0_i32_0 = arith.constant 0 : i32
    %c0_i32_1 = arith.constant 0 : i32
    return %c0_i32, %arg0, %c0_i32_0 : i32, i32, i32
  }
  func.func @transform_1(%arg0: i32) -> i32 {
    %c0_i32 = arith.constant 0 : i32
    %c0_i32_0 = arith.constant 0 : i32
    return %c0_i32 : i32
  }
  func.func @transform_2(%arg0: i32) -> i32 {
    %c0_i32 = arith.constant 0 : i32
    %c0_i32_0 = arith.constant 0 : i32
    return %c0_i32 : i32
  }
  func.func @transform_3(%arg0: i32) -> (i32, i32) {
    %c0_i32 = arith.constant 0 : i32
    %c0_i32_0 = arith.constant 0 : i32
    return %arg0, %c0_i32 : i32, i32
  }
}

</mosaic_0001>

<llo_original>
// kernel: discriminator_forward.1
$region0: #{discriminator_forward.1}
  #allocation0 [shape = 'u32[]', space=smem, size = 0x4, offset = 0x4, fixed_abs, tag = 'smem constant byte address 0x4 - core index']
  #allocation1 [shape = 'u32[144,128]{1,0:T(1,128)}', space=vmem, size = 0x12000, scoped, tag = 'internal scratch']
  #allocation2 [shape = 'f32[1]{0:T(128)S(6)}', space=smem, size = 0x200, scoped, tag = 'scoped memory for discriminator_forward.1']
  %s0 = inlined_call_operand.vmem [shape: f32[4,8,128], index: 0, kind: input, shape index: {}]
  %s1 = inlined_call_operand.vmem [shape: f32[4], index: 1, kind: input, shape index: {}]
  %s2 = inlined_call_operand.<no memory space> [shape: f32[1], index: 2, kind: input, shape index: {}]
  %s3 = inlined_call_operand.vmem [shape: f32[8,128], index: 3, kind: output, shape index: {}]
  %s4 = sld [smem:[#allocation0]]
  $region26: #{discriminator_forward.1} parent=0
    _
  %s6 = ssub.s32 1, %s4
  %s7 = scalar_select 0, %s6, %s4
  %8 = sst [smem:[#allocation2]] %s2
  $region1: #{discriminator_forward.1} parent=0
    #allocation3 [shape = 'u8[512]{0}', space=smem, size = 0x200, scoped, tag = 'input window, operand 1, single buffered']
    #allocation4 [shape = 's32[1]{0}', space=sflag, size = 0x4, scoped, tag = 'scoped memory for discriminator_forward.1']
    %9 = vsyncpa [#allocation4], 0
    // Predicated region
    $region2: #{discriminator_forward.1} parent=1 // pred_check
      _
    $region3: #{discriminator_forward.1} parent=1 // pred_check_branch
      %11 = sbr.rel (0) target = $region5
    $region4: #{discriminator_forward.1} parent=1 // pred_region
      _
    $region5: #{discriminator_forward.1} parent=1 // pred_fallthru
      _
    // Predicated region
    $region6: #{discriminator_forward.1} parent=1 // pred_check
      _
    $region7: #{discriminator_forward.1} parent=1 // pred_check_branch
      %13 = sbr.rel (0) target = $region9
    $region8: #{discriminator_forward.1} parent=1 // pred_region
      %s15 = ssub.s32 16, 16
      %16 = vsyncadd [#allocation4], %s15
      %s18 = sshll.u32 %s1, 4
      %s19 = int_to_ptr.vmem [resolvable:$true] %s18
      %21 = dma.vmem_to_smem %s19, 16, [#allocation3], [#allocation4]
    $region9: #{discriminator_forward.1} parent=1 // pred_fallthru
      _
    // Predicated region
    $region10: #{discriminator_forward.1} parent=1 // pred_check
      _
    $region11: #{discriminator_forward.1} parent=1 // pred_check_branch
      %23 = sbr.rel (0) target = $region13
    $region12: #{discriminator_forward.1} parent=1 // pred_region
      _
    $region13: #{discriminator_forward.1} parent=1 // pred_fallthru
      _
    // Predicated region
    $region14: #{discriminator_forward.1} parent=1 // pred_check
      _
    $region15: #{discriminator_forward.1} parent=1 // pred_check_branch
      %25 = sbr.rel (0) target = $region17
    $region16: #{discriminator_forward.1} parent=1 // pred_region
      %26 = dma.done [#allocation4], 16
    $region17: #{discriminator_forward.1} parent=1 // pred_fallthru
      _
    %27 = sfence
    %v28 = vld [vmem:[%s0] sm:$0xff]
    %s29 = sld [smem:[#allocation3]]
    %v30 = vstv %s29
    %v31 = vmul.f32 %v28, %v30
    %s32 = sld [smem:[#allocation2]]
    %v33 = vstv %s32
    %v34 = vadd.f32 %v31, %v33
    %s35 = scalar_lea.vmem %s0, 8
    %v36 = vld [vmem:[%s35] sm:$0xff]
    %s37 = sld [smem:[#allocation3 + $0x1]]
    %v38 = vstv %s37
    %v39 = vmul.f32 %v36, %v38
    %v40 = vadd.f32 %v34, %v39
    %s41 = scalar_lea.vmem %s0, 16
    %v42 = vld [vmem:[%s41] sm:$0xff]
    %s43 = sld [smem:[#allocation3 + $0x2]]
    %v44 = vstv %s43
    %v45 = vmul.f32 %v42, %v44
    %v46 = vadd.f32 %v40, %v45
    %s47 = scalar_lea.vmem %s0, 24
    %v48 = vld [vmem:[%s47] sm:$0xff]
    %s49 = sld [smem:[#allocation3 + $0x3]]
    %v50 = vstv %s49
    %v51 = vmul.f32 %v48, %v50
    %v52 = vadd.f32 %v46, %v51
    %v53 = vxor.u32 %v52, 2147483648
    %v54 = vmul.f32 %v53, 1.442695
    %v55 = vpow.pop %v54
    %v56 = vadd.f32 %v55, 1.0
    %v57 = vrcp.pop %v56
    %v58 = vmul.f32 1.0, %v57
    %59 = vst [vmem:[%s3] sm:$0xff] %v58
    // Predicated region
    $region18: #{discriminator_forward.1} parent=1 // pred_check
      _
    $region19: #{discriminator_forward.1} parent=1 // pred_check_branch
      %61 = sbr.rel (0) target = $region21
    $region20: #{discriminator_forward.1} parent=1 // pred_region
      _
    $region21: #{discriminator_forward.1} parent=1 // pred_fallthru
      _
    // Predicated region
    $region22: #{discriminator_forward.1} parent=1 // pred_check
      _
    $region23: #{discriminator_forward.1} parent=1 // pred_check_branch
      %63 = sbr.rel (0) target = $region25
    $region24: #{discriminator_forward.1} parent=1 // pred_region
      _
    $region25: #{discriminator_forward.1} parent=1 // pred_fallthru
      _
    %64 = vsyncpa [#allocation4], 1

</llo_original>
